<compile_context>
chip_gen: v5e
topology: v5e:2x2
jax: 0.10.0
libtpu: 0.0.40
codegen_flags: <defaults>
</compile_context>

<pallas_src>
import jax
import jax.numpy as jnp
from jax import lax
from jax.experimental import pallas as pl
from jax.experimental.pallas import tpu as pltpu


def _lietal_kernel(x1_ref, w1_ref, b1_ref,
                   w2p_ref, w2c_ref, w2n_ref, b2_ref,
                   sprev_ref, snext_ref,
                   wfc_ref, ind_ref, bfc_ref,
                   out_ref):
    f32 = jnp.float32

    # ---- conv1 (+bias, ReLU) as a single GEMM with Toeplitz-expanded weights ----
    a1 = jnp.dot(x1_ref[...], w1_ref[...], preferred_element_type=f32)
    a1 = jnp.maximum(a1 + b1_ref[...], 0.0)                    # (R, n_planes*9)

    # ---- conv2 (+bias, ReLU): depth shifts via constant 0/1 shift matrices ----
    a1_prev = jnp.dot(sprev_ref[...], a1, preferred_element_type=f32)
    a1_next = jnp.dot(snext_ref[...], a1, preferred_element_type=f32)
    y2 = jnp.dot(a1_prev, w2p_ref[...], preferred_element_type=f32)
    y2 = y2 + jnp.dot(a1, w2c_ref[...], preferred_element_type=f32)
    y2 = y2 + jnp.dot(a1_next, w2n_ref[...], preferred_element_type=f32)
    a2 = jnp.maximum(y2 + b2_ref[...], 0.0)                    # (R, 2*n_planes)

    # ---- fc: channel-major flatten folded into per-channel weight tiles ----
    n_out_ch = wfc_ref.shape[0]                                # 2*n_planes (static)
    contrib = a2[:, 0:1] * wfc_ref[0]                          # (R, n_classes)
    for o2 in range(1, n_out_ch):
        contrib = contrib + a2[:, o2:o2 + 1] * wfc_ref[o2]
    out = jnp.dot(ind_ref[...], contrib, preferred_element_type=f32)  # (B, n_classes)
    out_ref[...] = (out + bfc_ref[...]).astype(out_ref.dtype)


def lietal_forward(params, x):
    """LiEtAl forward. x: (B, 1, D, 5, 5) float32; params in PyTorch layouts."""
    w1, b1, w2, b2, wfc, bfc = params
    f32 = jnp.float32

    B, _, D, P, _ = x.shape
    assert P == 5, "LiEtAl uses patch_size=5 (conv2 spatial output must be 1x1)."
    O1 = w1.shape[0]                 # n_planes
    O2 = w2.shape[0]                 # 2*n_planes
    D1 = D - 4                       # spectral extent after both convs
    R = B * D1
    n_classes = wfc.shape[0]
    assert wfc.shape[1] == O2 * D1

    # conv1 input: depth-sliding (7,5,5) receptive slabs, flattened (row = (b,d)).
    xp = jnp.pad(x[:, 0].astype(f32), ((0, 0), (1, 1), (0, 0), (0, 0)))   # (B, D+2, 5, 5)
    wins = jnp.stack([xp[:, d:d + 7] for d in range(D1)], axis=1)         # (B, D1, 7, 5, 5)
    x1 = wins.reshape(R, 7 * 5 * 5)                                       # (R, 175)

    # conv1 weight, Toeplitz-expanded over the 3x3 spatial output positions.
    # Output-column layout: (o1, h, w) -- exactly the (cin, kh, kw) layout conv2 wants.
    w1t = jnp.transpose(w1[:, 0].astype(f32), (1, 2, 3, 0))               # (7, 3, 3, O1)
    w1big = jnp.zeros((7, 5, 5, O1, 3, 3), f32)
    for h in range(3):
        for w in range(3):
            w1big = w1big.at[:, h:h + 3, w:w + 3, :, h, w].set(w1t)
    w1big = w1big.reshape(7 * 5 * 5, O1 * 9)                              # (175, O1*9)
    b1row = jnp.repeat(b1.astype(f32), 9).reshape(1, O1 * 9)

    # conv2 weight split per depth offset kd; row layout (cin, kh, kw).
    w2f = w2.astype(f32)
    w2_k = [jnp.transpose(w2f[:, :, kd, :, :], (1, 2, 3, 0)).reshape(O1 * 9, O2)
            for kd in range(3)]                                           # 3 x (O1*9, O2)
    b2row = b2.astype(f32).reshape(1, O2)

    # constant depth-shift matrices (zeroed across batch boundaries == pad rows).
    r_idx = jnp.arange(R)
    d_idx = r_idx % D1
    sprev = jnp.eye(R, k=-1, dtype=f32) * (d_idx > 0)[:, None].astype(f32)       # row r <- r-1
    snext = jnp.eye(R, k=1, dtype=f32) * (d_idx < D1 - 1)[:, None].astype(f32)   # row r <- r+1

    # fc weight: fold PyTorch's channel-major flatten (f = o2*D1 + d) into tiles.
    wfct = wfc.astype(f32).T.reshape(O2, D1, n_classes)                   # [o2, d, c]
    wfc_tiles = jnp.tile(wfct, (1, B, 1))                                 # (O2, R, n_classes)
    ind = (r_idx[None, :] // D1 == jnp.arange(B)[:, None]).astype(f32)    # (B, R)
    bfc_row = bfc.astype(f32).reshape(1, n_classes)

    operands = (x1, w1big, b1row, w2_k[0], w2_k[1], w2_k[2], b2row,
                sprev, snext, wfc_tiles, ind, bfc_row)
    in_specs = [pl.BlockSpec(memory_space=pltpu.MemorySpace.VMEM)
                for _ in range(len(operands))]

    # Single kernel invocation (no grid): everything fits in scoped VMEM with
    # huge headroom (< 1 MiB total), so no pipeline / accumulator machinery.
    return pl.pallas_call(
        _lietal_kernel,
        out_shape=jax.ShapeDtypeStruct((B, n_classes), f32),
        in_specs=in_specs,
        out_specs=pl.BlockSpec(memory_space=pltpu.MemorySpace.VMEM),
    )(*operands)


def init_lietal_params(key, input_channels, n_classes, n_planes=2, patch_size=5):
    """Xavier-uniform weights, zero biases, PyTorch layouts."""
    assert patch_size == 5

    def xavier(k, shape, fan_in, fan_out):
        bound = (6.0 / (fan_in + fan_out)) ** 0.5
        return jax.random.uniform(k, shape, jnp.float32, -bound, bound)

    k1, k2, k3 = jax.random.split(key, 3)
    rf1 = 7 * 3 * 3
    w1 = xavier(k1, (n_planes, 1, 7, 3, 3), 1 * rf1, n_planes * rf1)
    b1 = jnp.zeros((n_planes,), jnp.float32)
    rf2 = 3 * 3 * 3
    w2 = xavier(k2, (2 * n_planes, n_planes, 3, 3, 3), n_planes * rf2, 2 * n_planes * rf2)
    b2 = jnp.zeros((2 * n_planes,), jnp.float32)
    features = 2 * n_planes * (input_channels - 4)
    wfc = xavier(k3, (n_classes, features), features, n_classes)
    bfc = jnp.zeros((n_classes,), jnp.float32)
    return (w1, b1, w2, b2, wfc, bfc)


def lietal_reference(params, x):
    """Plain-XLA reference (mirrors the PyTorch forward) for a sanity check."""
    w1, b1, w2, b2, wfc, bfc = params
    dn = ("NCDHW", "OIDHW", "NCDHW")
    y = lax.conv_general_dilated(x, w1, (1, 1, 1), [(1, 1), (0, 0), (0, 0)],
                                 dimension_numbers=dn)
    y = jax.nn.relu(y + b1.reshape(1, -1, 1, 1, 1))
    y = lax.conv_general_dilated(y, w2, (1, 1, 1), [(1, 1), (0, 0), (0, 0)],
                                 dimension_numbers=dn)
    y = jax.nn.relu(y + b2.reshape(1, -1, 1, 1, 1))
    y = y.reshape(y.shape[0], -1)
    return y @ wfc.T + bfc


if __name__ == "__main__":
    key = jax.random.PRNGKey(0)
    k_params, k_x = jax.random.split(key)

    batch = 2
    input_channels = 16   # spectral bands
    n_classes = 8
    n_planes = 2
    patch_size = 5

    params = init_lietal_params(k_params, input_channels, n_classes, n_planes, patch_size)
    x = jax.random.normal(
        k_x, (batch, 1, input_channels, patch_size, patch_size), dtype=jnp.float32)

    out = jax.jit(lietal_forward)(params, x)
    jax.block_until_ready(out)
    assert out.shape == (batch, n_classes), out.shape

    ref = lietal_reference(params, x)
    assert jnp.allclose(out, ref, rtol=2e-2, atol=2e-2), \
        float(jnp.max(jnp.abs(out - ref)))

    print("KERNEL_OK")
</pallas_src>

<mosaic_0001>
module attributes {stable_mosaic.version = 11 : i64} {
  func.func @_lietal_kernel(%arg0: memref<24x175xf32, #tpu.memory_space<vmem>>, %arg1: memref<175x18xf32, #tpu.memory_space<vmem>>, %arg2: memref<1x18xf32, #tpu.memory_space<vmem>>, %arg3: memref<18x4xf32, #tpu.memory_space<vmem>>, %arg4: memref<18x4xf32, #tpu.memory_space<vmem>>, %arg5: memref<18x4xf32, #tpu.memory_space<vmem>>, %arg6: memref<1x4xf32, #tpu.memory_space<vmem>>, %arg7: memref<24x24xf32, #tpu.memory_space<vmem>>, %arg8: memref<24x24xf32, #tpu.memory_space<vmem>>, %arg9: memref<4x24x8xf32, #tpu.memory_space<vmem>>, %arg10: memref<2x24xf32, #tpu.memory_space<vmem>>, %arg11: memref<1x8xf32, #tpu.memory_space<vmem>>, %arg12: memref<2x8xf32, #tpu.memory_space<vmem>>) attributes {dimension_semantics = [], scalar_prefetch = 0 : i64, scratch_operands = 0 : i64, tpu.core_type = #tpu.core_type<tc>} {
    %c0 = arith.constant 0 : index
    %c0_0 = arith.constant 0 : index
    %0 = vector.load %arg0[%c0, %c0_0] : memref<24x175xf32, #tpu.memory_space<vmem>>, vector<24x175xf32>
    %c0_1 = arith.constant 0 : index
    %c0_2 = arith.constant 0 : index
    %1 = vector.load %arg1[%c0_1, %c0_2] : memref<175x18xf32, #tpu.memory_space<vmem>>, vector<175x18xf32>
    %cst = arith.constant dense<0.000000e+00> : vector<24x18xf32>
    %2 = tpu.matmul %0, %1, %cst {dimension_numbers = #tpu.dot_dimension_numbers<[1], [0], [0], [1], [0, 0, 1, 1], [], []>} : vector<24x175xf32>, vector<175x18xf32>, vector<24x18xf32> -> vector<24x18xf32>
    %c0_3 = arith.constant 0 : index
    %c0_4 = arith.constant 0 : index
    %3 = vector.load %arg2[%c0_3, %c0_4] : memref<1x18xf32, #tpu.memory_space<vmem>>, vector<1x18xf32>
    %4 = vector.broadcast %3 : vector<1x18xf32> to vector<24x18xf32>
    %5 = arith.addf %2, %4 : vector<24x18xf32>
    %cst_5 = arith.constant 0.000000e+00 : f32
    %6 = vector.broadcast %cst_5 : f32 to vector<24x18xf32>
    %7 = arith.maximumf %5, %6 : vector<24x18xf32>
    %c0_6 = arith.constant 0 : index
    %c0_7 = arith.constant 0 : index
    %8 = vector.load %arg7[%c0_6, %c0_7] : memref<24x24xf32, #tpu.memory_space<vmem>>, vector<24x24xf32>
    %cst_8 = arith.constant dense<0.000000e+00> : vector<24x18xf32>
    %9 = tpu.matmul %8, %7, %cst_8 {dimension_numbers = #tpu.dot_dimension_numbers<[1], [0], [0], [1], [0, 0, 1, 1], [], []>} : vector<24x24xf32>, vector<24x18xf32>, vector<24x18xf32> -> vector<24x18xf32>
    %c0_9 = arith.constant 0 : index
    %c0_10 = arith.constant 0 : index
    %10 = vector.load %arg8[%c0_9, %c0_10] : memref<24x24xf32, #tpu.memory_space<vmem>>, vector<24x24xf32>
    %cst_11 = arith.constant dense<0.000000e+00> : vector<24x18xf32>
    %11 = tpu.matmul %10, %7, %cst_11 {dimension_numbers = #tpu.dot_dimension_numbers<[1], [0], [0], [1], [0, 0, 1, 1], [], []>} : vector<24x24xf32>, vector<24x18xf32>, vector<24x18xf32> -> vector<24x18xf32>
    %c0_12 = arith.constant 0 : index
    %c0_13 = arith.constant 0 : index
    %12 = vector.load %arg3[%c0_12, %c0_13] : memref<18x4xf32, #tpu.memory_space<vmem>>, vector<18x4xf32>
    %cst_14 = arith.constant dense<0.000000e+00> : vector<24x4xf32>
    %13 = tpu.matmul %9, %12, %cst_14 {dimension_numbers = #tpu.dot_dimension_numbers<[1], [0], [0], [1], [0, 0, 1, 1], [], []>} : vector<24x18xf32>, vector<18x4xf32>, vector<24x4xf32> -> vector<24x4xf32>
    %c0_15 = arith.constant 0 : index
    %c0_16 = arith.constant 0 : index
    %14 = vector.load %arg4[%c0_15, %c0_16] : memref<18x4xf32, #tpu.memory_space<vmem>>, vector<18x4xf32>
    %cst_17 = arith.constant dense<0.000000e+00> : vector<24x4xf32>
    %15 = tpu.matmul %7, %14, %cst_17 {dimension_numbers = #tpu.dot_dimension_numbers<[1], [0], [0], [1], [0, 0, 1, 1], [], []>} : vector<24x18xf32>, vector<18x4xf32>, vector<24x4xf32> -> vector<24x4xf32>
    %16 = arith.addf %13, %15 : vector<24x4xf32>
    %c0_18 = arith.constant 0 : index
    %c0_19 = arith.constant 0 : index
    %17 = vector.load %arg5[%c0_18, %c0_19] : memref<18x4xf32, #tpu.memory_space<vmem>>, vector<18x4xf32>
    %cst_20 = arith.constant dense<0.000000e+00> : vector<24x4xf32>
    %18 = tpu.matmul %11, %17, %cst_20 {dimension_numbers = #tpu.dot_dimension_numbers<[1], [0], [0], [1], [0, 0, 1, 1], [], []>} : vector<24x18xf32>, vector<18x4xf32>, vector<24x4xf32> -> vector<24x4xf32>
    %19 = arith.addf %16, %18 : vector<24x4xf32>
    %c0_21 = arith.constant 0 : index
    %c0_22 = arith.constant 0 : index
    %20 = vector.load %arg6[%c0_21, %c0_22] : memref<1x4xf32, #tpu.memory_space<vmem>>, vector<1x4xf32>
    %21 = vector.broadcast %20 : vector<1x4xf32> to vector<24x4xf32>
    %22 = arith.addf %19, %21 : vector<24x4xf32>
    %cst_23 = arith.constant 0.000000e+00 : f32
    %23 = vector.broadcast %cst_23 : f32 to vector<24x4xf32>
    %24 = arith.maximumf %22, %23 : vector<24x4xf32>
    %25 = vector.extract_strided_slice %24 {offsets = [0, 0], sizes = [24, 1], strides = [1, 1]} : vector<24x4xf32> to vector<24x1xf32>
    %c0_24 = arith.constant 0 : index
    %c0_25 = arith.constant 0 : index
    %c0_26 = arith.constant 0 : index
    %26 = vector.load %arg9[%c0_24, %c0_25, %c0_26] : memref<4x24x8xf32, #tpu.memory_space<vmem>>, vector<1x24x8xf32>
    %27 = vector.shape_cast %26 : vector<1x24x8xf32> to vector<24x8xf32>
    %28 = vector.broadcast %25 : vector<24x1xf32> to vector<24x8xf32>
    %29 = arith.mulf %28, %27 : vector<24x8xf32>
    %30 = vector.extract_strided_slice %24 {offsets = [0, 1], sizes = [24, 1], strides = [1, 1]} : vector<24x4xf32> to vector<24x1xf32>
    %c1 = arith.constant 1 : index
    %c0_27 = arith.constant 0 : index
    %c0_28 = arith.constant 0 : index
    %31 = vector.load %arg9[%c1, %c0_27, %c0_28] : memref<4x24x8xf32, #tpu.memory_space<vmem>>, vector<1x24x8xf32>
    %32 = vector.shape_cast %31 : vector<1x24x8xf32> to vector<24x8xf32>
    %33 = vector.broadcast %30 : vector<24x1xf32> to vector<24x8xf32>
    %34 = arith.mulf %33, %32 : vector<24x8xf32>
    %35 = arith.addf %29, %34 : vector<24x8xf32>
    %36 = vector.extract_strided_slice %24 {offsets = [0, 2], sizes = [24, 1], strides = [1, 1]} : vector<24x4xf32> to vector<24x1xf32>
    %c2 = arith.constant 2 : index
    %c0_29 = arith.constant 0 : index
    %c0_30 = arith.constant 0 : index
    %37 = vector.load %arg9[%c2, %c0_29, %c0_30] : memref<4x24x8xf32, #tpu.memory_space<vmem>>, vector<1x24x8xf32>
    %38 = vector.shape_cast %37 : vector<1x24x8xf32> to vector<24x8xf32>
    %39 = vector.broadcast %36 : vector<24x1xf32> to vector<24x8xf32>
    %40 = arith.mulf %39, %38 : vector<24x8xf32>
    %41 = arith.addf %35, %40 : vector<24x8xf32>
    %42 = vector.extract_strided_slice %24 {offsets = [0, 3], sizes = [24, 1], strides = [1, 1]} : vector<24x4xf32> to vector<24x1xf32>
    %c3 = arith.constant 3 : index
    %c0_31 = arith.constant 0 : index
    %c0_32 = arith.constant 0 : index
    %43 = vector.load %arg9[%c3, %c0_31, %c0_32] : memref<4x24x8xf32, #tpu.memory_space<vmem>>, vector<1x24x8xf32>
    %44 = vector.shape_cast %43 : vector<1x24x8xf32> to vector<24x8xf32>
    %45 = vector.broadcast %42 : vector<24x1xf32> to vector<24x8xf32>
    %46 = arith.mulf %45, %44 : vector<24x8xf32>
    %47 = arith.addf %41, %46 : vector<24x8xf32>
    %c0_33 = arith.constant 0 : index
    %c0_34 = arith.constant 0 : index
    %48 = vector.load %arg10[%c0_33, %c0_34] : memref<2x24xf32, #tpu.memory_space<vmem>>, vector<2x24xf32>
    %cst_35 = arith.constant dense<0.000000e+00> : vector<2x8xf32>
    %49 = tpu.matmul %48, %47, %cst_35 {dimension_numbers = #tpu.dot_dimension_numbers<[1], [0], [0], [1], [0, 0, 1, 1], [], []>} : vector<2x24xf32>, vector<24x8xf32>, vector<2x8xf32> -> vector<2x8xf32>
    %c0_36 = arith.constant 0 : index
    %c0_37 = arith.constant 0 : index
    %50 = vector.load %arg11[%c0_36, %c0_37] : memref<1x8xf32, #tpu.memory_space<vmem>>, vector<1x8xf32>
    %51 = vector.broadcast %50 : vector<1x8xf32> to vector<2x8xf32>
    %52 = arith.addf %49, %51 : vector<2x8xf32>
    %c0_38 = arith.constant 0 : index
    %c0_39 = arith.constant 0 : index
    %53 = vector.load %arg12[%c0_38, %c0_39] : memref<2x8xf32, #tpu.memory_space<vmem>>, vector<2x8xf32>
    tpu.vector_store %arg12[%c0_38, %c0_39], %52 {strides = array<i32>} : memref<2x8xf32, #tpu.memory_space<vmem>>, vector<2x8xf32>,
    return
  }
}

</mosaic_0001>

<llo_original>
// kernel: tile.7
$region0: #{tile.7}
  %s0 = inlined_call_operand.vmem [shape: f32[4,2,12,8], index: 0, kind: input, shape index: {}]
  %s1 = inlined_call_operand.vmem [shape: f32[4,24,8], index: 1, kind: output, shape index: {}]
  $region1: #{tile.7} parent=0
    #allocation0 [shape = 'u8[131072]{0}', space=vmem, size = 0x20000, scoped, tag = 'scoped mem for input reshape']
    %s3 = ssub.s32 4, 1
    %s4 = scalar_lea.vmem %s0, 62
    %v5 = vld [vmem:[%s4] sm:%s3]
    %s6 = scalar_lea.vmem [#allocation0], 248
    %7 = vst [vmem:[%s6] sm:%s3] %v5
    %s8 = scalar_lea.vmem %s0, 60
    %v9 = vld [vmem:[%s8] sm:%s3]
    %s10 = scalar_lea.vmem [#allocation0], 240
    %11 = vst [vmem:[%s10] sm:%s3] %v9
    %s12 = scalar_lea.vmem %s0, 58
    %v13 = vld [vmem:[%s12] sm:%s3]
    %s14 = scalar_lea.vmem [#allocation0], 232
    %15 = vst [vmem:[%s14] sm:%s3] %v13
    %s16 = scalar_lea.vmem %s0, 56
    %v17 = vld [vmem:[%s16] sm:%s3]
    %s18 = scalar_lea.vmem [#allocation0], 224
    %19 = vst [vmem:[%s18] sm:%s3] %v17
    %s20 = scalar_lea.vmem %s0, 54
    %v21 = vld [vmem:[%s20] sm:%s3]
    %s22 = scalar_lea.vmem [#allocation0], 216
    %23 = vst [vmem:[%s22] sm:%s3] %v21
    %s24 = scalar_lea.vmem %s0, 52
    %v25 = vld [vmem:[%s24] sm:%s3]
    %s26 = scalar_lea.vmem [#allocation0], 208
    %27 = vst [vmem:[%s26] sm:%s3] %v25
    %s28 = scalar_lea.vmem %s0, 50
    %v29 = vld [vmem:[%s28] sm:%s3]
    %s30 = scalar_lea.vmem [#allocation0], 200
    %31 = vst [vmem:[%s30] sm:%s3] %v29
    %s32 = scalar_lea.vmem %s0, 48
    %v33 = vld [vmem:[%s32] sm:%s3]
    %s34 = scalar_lea.vmem [#allocation0], 192
    %35 = vst [vmem:[%s34] sm:%s3] %v33
    %s36 = scalar_lea.vmem %s0, 46
    %v37 = vld [vmem:[%s36] sm:%s3]
    %s38 = scalar_lea.vmem [#allocation0], 184
    %39 = vst [vmem:[%s38] sm:%s3] %v37
    %s40 = scalar_lea.vmem %s0, 44
    %v41 = vld [vmem:[%s40] sm:%s3]
    %s42 = scalar_lea.vmem [#allocation0], 176
    %43 = vst [vmem:[%s42] sm:%s3] %v41
    %s44 = scalar_lea.vmem %s0, 42
    %v45 = vld [vmem:[%s44] sm:%s3]
    %s46 = scalar_lea.vmem [#allocation0], 168
    %47 = vst [vmem:[%s46] sm:%s3] %v45
    %s48 = scalar_lea.vmem %s0, 40
    %v49 = vld [vmem:[%s48] sm:%s3]
    %s50 = scalar_lea.vmem [#allocation0], 160
    %51 = vst [vmem:[%s50] sm:%s3] %v49
    %s52 = scalar_lea.vmem %s0, 38
    %v53 = vld [vmem:[%s52] sm:%s3]
    %s54 = scalar_lea.vmem [#allocation0], 152
    %55 = vst [vmem:[%s54] sm:%s3] %v53
    %s56 = scalar_lea.vmem %s0, 36
    %v57 = vld [vmem:[%s56] sm:%s3]
    %s58 = scalar_lea.vmem [#allocation0], 144
    %59 = vst [vmem:[%s58] sm:%s3] %v57
    %s60 = scalar_lea.vmem %s0, 34
    %v61 = vld [vmem:[%s60] sm:%s3]
    %s62 = scalar_lea.vmem [#allocation0], 136
    %63 = vst [vmem:[%s62] sm:%s3] %v61
    %s64 = scalar_lea.vmem %s0, 32
    %v65 = vld [vmem:[%s64] sm:%s3]
    %s66 = scalar_lea.vmem [#allocation0], 128
    %67 = vst [vmem:[%s66] sm:%s3] %v65
    %s68 = scalar_lea.vmem %s0, 30
    %v69 = vld [vmem:[%s68] sm:%s3]
    %s70 = scalar_lea.vmem [#allocation0], 120
    %71 = vst [vmem:[%s70] sm:%s3] %v69
    %s72 = scalar_lea.vmem %s0, 28
    %v73 = vld [vmem:[%s72] sm:%s3]
    %s74 = scalar_lea.vmem [#allocation0], 112
    %75 = vst [vmem:[%s74] sm:%s3] %v73
    %s76 = scalar_lea.vmem %s0, 26
    %v77 = vld [vmem:[%s76] sm:%s3]
    %s78 = scalar_lea.vmem [#allocation0], 104
    %79 = vst [vmem:[%s78] sm:%s3] %v77
    %s80 = scalar_lea.vmem %s0, 24
    %v81 = vld [vmem:[%s80] sm:%s3]
    %s82 = scalar_lea.vmem [#allocation0], 96
    %83 = vst [vmem:[%s82] sm:%s3] %v81
    %s84 = scalar_lea.vmem %s0, 22
    %v85 = vld [vmem:[%s84] sm:%s3]
    %s86 = scalar_lea.vmem [#allocation0], 88
    %87 = vst [vmem:[%s86] sm:%s3] %v85
    %s88 = scalar_lea.vmem %s0, 20
    %v89 = vld [vmem:[%s88] sm:%s3]
    %s90 = scalar_lea.vmem [#allocation0], 80
    %91 = vst [vmem:[%s90] sm:%s3] %v89
    %s92 = scalar_lea.vmem %s0, 18
    %v93 = vld [vmem:[%s92] sm:%s3]
    %s94 = scalar_lea.vmem [#allocation0], 72
    %95 = vst [vmem:[%s94] sm:%s3] %v93
    %s96 = scalar_lea.vmem %s0, 16
    %v97 = vld [vmem:[%s96] sm:%s3]
    %s98 = scalar_lea.vmem [#allocation0], 64
    %99 = vst [vmem:[%s98] sm:%s3] %v97
    %s100 = scalar_lea.vmem %s0, 14
    %v101 = vld [vmem:[%s100] sm:%s3]
    %s102 = scalar_lea.vmem [#allocation0], 56
    %103 = vst [vmem:[%s102] sm:%s3] %v101
    %s104 = scalar_lea.vmem %s0, 12
    %v105 = vld [vmem:[%s104] sm:%s3]
    %s106 = scalar_lea.vmem [#allocation0], 48
    %107 = vst [vmem:[%s106] sm:%s3] %v105
    %s108 = scalar_lea.vmem %s0, 10
    %v109 = vld [vmem:[%s108] sm:%s3]
    %s110 = scalar_lea.vmem [#allocation0], 40
    %111 = vst [vmem:[%s110] sm:%s3] %v109
    %s112 = scalar_lea.vmem %s0, 8
    %v113 = vld [vmem:[%s112] sm:%s3]
    %s114 = scalar_lea.vmem [#allocation0], 32
    %115 = vst [vmem:[%s114] sm:%s3] %v113
    %s116 = scalar_lea.vmem %s0, 6
    %v117 = vld [vmem:[%s116] sm:%s3]
    %s118 = scalar_lea.vmem [#allocation0], 24
    %119 = vst [vmem:[%s118] sm:%s3] %v117
    %s120 = scalar_lea.vmem %s0, 4
    %v121 = vld [vmem:[%s120] sm:%s3]
    %s122 = scalar_lea.vmem [#allocation0], 16
    %123 = vst [vmem:[%s122] sm:%s3] %v121
    %s124 = scalar_lea.vmem %s0, 2
    %v125 = vld [vmem:[%s124] sm:%s3]
    %s126 = scalar_lea.vmem [#allocation0], 8
    %127 = vst [vmem:[%s126] sm:%s3] %v125
    %v128 = vld [vmem:[%s0] sm:%s3]
    %129 = vst [vmem:[#allocation0] sm:%s3] %v128
    %v130 = vld [vmem:[#allocation0] ss:$8 sm:$0xf]
    %v131 = vld [vmem:[#allocation0] ss:$8 sm:$0xf0]
    %vm132 = vcmask 1047556
    %v133 = vsel %vm132, %v131, %v130
    %vm134 = vcmask 97280
    %135 = vst.msk [vmem:[%s1] sm:$0xff] %vm134, %v133
    %s136 = scalar_lea.vmem [#allocation0], 64
    %v137 = vld [vmem:[%s136] ss:$8 sm:$0xf]
    %s138 = scalar_lea.vmem [#allocation0], 64
    %v139 = vld [vmem:[%s138] ss:$8 sm:$0xf0]
    %vm140 = vcmask 1047556
    %v141 = vsel %vm140, %v139, %v137
    %vm142 = vcmask 97280
    %s143 = scalar_lea.vmem %s1, 8
    %144 = vst.msk [vmem:[%s143] sm:$0xff] %vm142, %v141
    %s145 = scalar_lea.vmem [#allocation0], 128
    %v146 = vld [vmem:[%s145] ss:$8 sm:$0xf]
    %s147 = scalar_lea.vmem [#allocation0], 128
    %v148 = vld [vmem:[%s147] ss:$8 sm:$0xf0]
    %vm149 = vcmask 1047556
    %v150 = vsel %vm149, %v148, %v146
    %vm151 = vcmask 97280
    %s152 = scalar_lea.vmem %s1, 16
    %153 = vst.msk [vmem:[%s152] sm:$0xff] %vm151, %v150
    %s154 = scalar_lea.vmem [#allocation0], 192
    %v155 = vld [vmem:[%s154] ss:$8 sm:$0xf]
    %s156 = scalar_lea.vmem [#allocation0], 192
    %v157 = vld [vmem:[%s156] ss:$8 sm:$0xf0]
    %vm158 = vcmask 1047556
    %v159 = vsel %vm158, %v157, %v155
    %vm160 = vcmask 97280
    %s161 = scalar_lea.vmem %s1, 24
    %162 = vst.msk [vmem:[%s161] sm:$0xff] %vm160, %v159
    %s163 = scalar_lea.vmem [#allocation0], 1
    %v164 = vld [vmem:[%s163] ss:$8 sm:$0xf]
    %s165 = scalar_lea.vmem [#allocation0], 1
    %v166 = vld [vmem:[%s165] ss:$8 sm:$0xf0]
    %vm167 = vcmask 1047556
    %v168 = vsel %vm167, %v166, %v164
    %169 = vrot.lane.b32.xlu0 %v168, 12
    %v170 = vpop.permute.xlu0 %169
    %vm171 = vcmask 195680
    %172 = vst.msk [vmem:[%s1] sm:$0xff] %vm171, %v170
    %s173 = scalar_lea.vmem [#allocation0], 65
    %v174 = vld [vmem:[%s173] ss:$8 sm:$0xf]
    %s175 = scalar_lea.vmem [#allocation0], 65
    %v176 = vld [vmem:[%s175] ss:$8 sm:$0xf0]
    %vm177 = vcmask 1047556
    %v178 = vsel %vm177, %v176, %v174
    %179 = vrot.lane.b32.xlu0 %v178, 12
    %v180 = vpop.permute.xlu0 %179
    %vm181 = vcmask 195680
    %s182 = scalar_lea.vmem %s1, 8
    %183 = vst.msk [vmem:[%s182] sm:$0xff] %vm181, %v180
    %s184 = scalar_lea.vmem [#allocation0], 129
    %v185 = vld [vmem:[%s184] ss:$8 sm:$0xf]
    %s186 = scalar_lea.vmem [#allocation0], 129
    %v187 = vld [vmem:[%s186] ss:$8 sm:$0xf0]
    %vm188 = vcmask 1047556
    %v189 = vsel %vm188, %v187, %v185
    %190 = vrot.lane.b32.xlu0 %v189, 12
    %v191 = vpop.permute.xlu0 %190
    %vm192 = vcmask 195680
    %s193 = scalar_lea.vmem %s1, 16
    %194 = vst.msk [vmem:[%s193] sm:$0xff] %vm192, %v191
    %s195 = scalar_lea.vmem [#allocation0], 193
    %v196 = vld [vmem:[%s195] ss:$8 sm:$0xf]
    %s197 = scalar_lea.vmem [#allocation0], 193
    %v198 = vld [vmem:[%s197] ss:$8 sm:$0xf0]
    %vm199 = vcmask 1047556
    %v200 = vsel %vm199, %v198, %v196
    %201 = vrot.lane.b32.xlu0 %v200, 12
    %v202 = vpop.permute.xlu0 %201
    %vm203 = vcmask 195680
    %s204 = scalar_lea.vmem %s1, 24
    %205 = vst.msk [vmem:[%s204] sm:$0xff] %vm203, %v202

// kernel: lietal_forward.1
$region0: #{lietal_forward.1}
  #allocation0 [shape = 'u32[]', space=smem, size = 0x4, offset = 0x4, fixed_abs, tag = 'smem constant byte address 0x4 - core index']
  #allocation1 [shape = 'u32[72,128]{1,0:T(1,128)}', space=vmem, size = 0x9000, scoped, tag = 'internal scratch']
  %s0 = inlined_call_operand.vmem [shape: f32[24,175], index: 0, kind: input, shape index: {}]
  %s1 = inlined_call_operand.vmem [shape: f32[175,18], index: 1, kind: input, shape index: {}]
  %s2 = inlined_call_operand.vmem [shape: f32[1,18], index: 2, kind: input, shape index: {}]
  %s3 = inlined_call_operand.vmem [shape: f32[18,4], index: 3, kind: input, shape index: {}]
  %s4 = inlined_call_operand.vmem [shape: f32[18,4], index: 4, kind: input, shape index: {}]
  %s5 = inlined_call_operand.vmem [shape: f32[18,4], index: 5, kind: input, shape index: {}]
  %s6 = inlined_call_operand.vmem [shape: f32[1,4], index: 6, kind: input, shape index: {}]
  %s7 = inlined_call_operand.vmem [shape: f32[24,24], index: 7, kind: input, shape index: {}]
  %s8 = inlined_call_operand.vmem [shape: f32[24,24], index: 8, kind: input, shape index: {}]
  %s9 = inlined_call_operand.vmem [shape: f32[4,24,8], index: 9, kind: input, shape index: {}]
  %s10 = inlined_call_operand.vmem [shape: f32[2,24], index: 10, kind: input, shape index: {}]
  %s11 = inlined_call_operand.vmem [shape: f32[1,8], index: 11, kind: input, shape index: {}]
  %s12 = inlined_call_operand.hbm [shape: f32[2,8], index: 12, kind: output, shape index: {}]
  %s13 = sld [smem:[#allocation0]]
  $region58: #{lietal_forward.1} parent=0
    _
  %s15 = ssub.s32 1, %s13
  %s16 = scalar_select 0, %s15, %s13
  $region1: #{lietal_forward.1} parent=0
    #allocation2 [shape = 'u8[1024]{0}', space=vmem, size = 0x400, scoped, tag = 'output window, operand 0, single buffered']
    #allocation3 [shape = 's32[1]{0}', space=sflag, size = 0x4, scoped, tag = 'scoped memory for lietal_forward.1']
    %17 = vsyncpa [#allocation3], 0
    // Predicated region
    $region2: #{lietal_forward.1} parent=1 // pred_check
      _
    $region3: #{lietal_forward.1} parent=1 // pred_check_branch
      %19 = sbr.rel (0) target = $region5
    $region4: #{lietal_forward.1} parent=1 // pred_region
      _
    $region5: #{lietal_forward.1} parent=1 // pred_fallthru
      _
    // Predicated region
    $region6: #{lietal_forward.1} parent=1 // pred_check
      _
    $region7: #{lietal_forward.1} parent=1 // pred_check_branch
      %21 = sbr.rel (0) target = $region9
    $region8: #{lietal_forward.1} parent=1 // pred_region
      _
    $region9: #{lietal_forward.1} parent=1 // pred_fallthru
      _
    // Predicated region
    $region10: #{lietal_forward.1} parent=1 // pred_check
      _
    $region11: #{lietal_forward.1} parent=1 // pred_check_branch
      %23 = sbr.rel (0) target = $region13
    $region12: #{lietal_forward.1} parent=1 // pred_region
      _
    $region13: #{lietal_forward.1} parent=1 // pred_fallthru
      _
    // Predicated region
    $region14: #{lietal_forward.1} parent=1 // pred_check
      _
    $region15: #{lietal_forward.1} parent=1 // pred_check_branch
      %25 = sbr.rel (0) target = $region17
    $region16: #{lietal_forward.1} parent=1 // pred_region
      _
    $region17: #{lietal_forward.1} parent=1 // pred_fallthru
      _
    // Predicated region
    $region18: #{lietal_forward.1} parent=1 // pred_check
      _
    $region19: #{lietal_forward.1} parent=1 // pred_check_branch
      %27 = sbr.rel (0) target = $region21
    $region20: #{lietal_forward.1} parent=1 // pred_region
      _
    $region21: #{lietal_forward.1} parent=1 // pred_fallthru
      _
    // Predicated region
    $region22: #{lietal_forward.1} parent=1 // pred_check
      _
    $region23: #{lietal_forward.1} parent=1 // pred_check_branch
      %29 = sbr.rel (0) target = $region25
    $region24: #{lietal_forward.1} parent=1 // pred_region
      _
    $region25: #{lietal_forward.1} parent=1 // pred_fallthru
      _
    // Predicated region
    $region26: #{lietal_forward.1} parent=1 // pred_check
      _
    $region27: #{lietal_forward.1} parent=1 // pred_check_branch
      %31 = sbr.rel (0) target = $region29
    $region28: #{lietal_forward.1} parent=1 // pred_region
      _
    $region29: #{lietal_forward.1} parent=1 // pred_fallthru
      _
    // Predicated region
    $region30: #{lietal_forward.1} parent=1 // pred_check
      _
    $region31: #{lietal_forward.1} parent=1 // pred_check_branch
      %33 = sbr.rel (0) target = $region33
    $region32: #{lietal_forward.1} parent=1 // pred_region
      _
    $region33: #{lietal_forward.1} parent=1 // pred_fallthru
      _
    // Predicated region
    $region34: #{lietal_forward.1} parent=1 // pred_check
      _
    $region35: #{lietal_forward.1} parent=1 // pred_check_branch
      %35 = sbr.rel (0) target = $region37
    $region36: #{lietal_forward.1} parent=1 // pred_region
      _
    $region37: #{lietal_forward.1} parent=1 // pred_fallthru
      _
    // Predicated region
    $region38: #{lietal_forward.1} parent=1 // pred_check
      _
    $region39: #{lietal_forward.1} parent=1 // pred_check_branch
      %37 = sbr.rel (0) target = $region41
    $region40: #{lietal_forward.1} parent=1 // pred_region
      _
    $region41: #{lietal_forward.1} parent=1 // pred_fallthru
      _
    // Predicated region
    $region42: #{lietal_forward.1} parent=1 // pred_check
      _
    $region43: #{lietal_forward.1} parent=1 // pred_check_branch
      %39 = sbr.rel (0) target = $region45
    $region44: #{lietal_forward.1} parent=1 // pred_region
      _
    $region45: #{lietal_forward.1} parent=1 // pred_fallthru
      _
    // Predicated region
    $region46: #{lietal_forward.1} parent=1 // pred_check
      _
    $region47: #{lietal_forward.1} parent=1 // pred_check_branch
      %41 = sbr.rel (0) target = $region49
    $region48: #{lietal_forward.1} parent=1 // pred_region
      _
    $region49: #{lietal_forward.1} parent=1 // pred_fallthru
      _
    %v42 = vld [vmem:[%s0] sm:$0xff]
    %v43 = vld [vmem:[%s0 + $0x8] sm:$0xff]
    %v44 = vld [vmem:[%s0 + $0x10] sm:$0xff]
    %v45 = vld [vmem:[%s0 + $0x18] sm:$0xff]
    %v46 = vld [vmem:[%s0 + $0x20] sm:$0xff]
    %v47 = vld [vmem:[%s0 + $0x28] sm:$0xff]
    %v48 = vld [vmem:[%s1] sm:$0xff]
    %v49 = vld [vmem:[%s1 + $0x8] sm:$0xff]
    %v50 = vld [vmem:[%s1 + $0x10] sm:$0xff]
    %v51 = vld [vmem:[%s1 + $0x18] sm:$0xff]
    %v52 = vld [vmem:[%s1 + $0x20] sm:$0xff]
    %v53 = vld [vmem:[%s1 + $0x28] sm:$0xff]
    %v54 = vld [vmem:[%s1 + $0x30] sm:$0xff]
    %v55 = vld [vmem:[%s1 + $0x38] sm:$0xff]
    %v56 = vld [vmem:[%s1 + $0x40] sm:$0xff]
    %v57 = vld [vmem:[%s1 + $0x48] sm:$0xff]
    %v58 = vld [vmem:[%s1 + $0x50] sm:$0xff]
    %v59 = vld [vmem:[%s1 + $0x58] sm:$0xff]
    %v60 = vld [vmem:[%s1 + $0x60] sm:$0xff]
    %v61 = vld [vmem:[%s1 + $0x68] sm:$0xff]
    %v62 = vld [vmem:[%s1 + $0x70] sm:$0xff]
    %v63 = vld [vmem:[%s1 + $0x78] sm:$0xff]
    %v64 = vld [vmem:[%s1 + $0x80] sm:$0xff]
    %v65 = vld [vmem:[%s1 + $0x88] sm:$0xff]
    %v66 = vld [vmem:[%s1 + $0x90] sm:$0xff]
    %v67 = vld [vmem:[%s1 + $0x98] sm:$0xff]
    %v68 = vld [vmem:[%s1 + $0xa0] sm:$0xff]
    %v69 = vld [vmem:[%s1 + $0xa8] sm:$0x7f]
    %v70 = vld [vmem:[%s2] sm:$0x1]
    %v72 = vperm.slane %v70, 0
    %vm74 = vcmask 384000
    %v76 = vsel %vm74, %v43, 0
    %v79 = vsel %vm74, %v45, 0
    %v82 = vsel %vm74, %v47, 0
    %vm84 = vcmask 1046528
    %v86 = vsel %vm84, %v69, 0
    %88 = vmatpush.msra.mxu0 %v63
    %89 = vmatpush.msra.mxu0 %v62
    %90 = vmatpush.msra.mxu0 %v61
    %91 = vmatpush.msra.mxu0 %v60
    %92 = vmatpush.msra.mxu0 %v59
    %93 = vmatpush.msra.mxu0 %v58
    %94 = vmatpush.msra.mxu0 %v57
    %95 = vmatpush.msra.mxu0 %v56
    %96 = vmatpush.msra.mxu0 %v55
    %97 = vmatpush.msra.mxu0 %v54
    %98 = vmatpush.msra.mxu0 %v53
    %99 = vmatpush.msra.mxu0 %v52
    %100 = vmatpush.msra.mxu0 %v51
    %101 = vmatpush.msra.mxu0 %v50
    %102 = vmatpush.msra.mxu0 %v49
    %103 = vmatpush.msra.mxu0 %v48
    %104 = vmatmul.f32.gmra.mxu0 %v42
    %v105 = vpop.f32.mrf.mxu0
    %v106 = vadd.f32 %v72, %v105
    %107 = vmatmul.f32.gmra.mxu0 %v44
    %v108 = vpop.f32.mrf.mxu0
    %v109 = vadd.f32 %v72, %v108
    %110 = vmatmul.f32.gmra.mxu0 %v46
    %v111 = vpop.f32.mrf.mxu0
    %v112 = vadd.f32 %v72, %v111
    %113 = vdwg.mxu0
    %114 = vmatpush.msra.mxu0 0.0
    %115 = vmatpush.msra.mxu0 0.0
    %116 = vmatpush.msra.mxu0 0.0
    %117 = vmatpush.msra.mxu0 0.0
    %118 = vmatpush.msra.mxu0 0.0
    %119 = vmatpush.msra.mxu0 0.0
    %120 = vmatpush.msra.mxu0 0.0
    %121 = vmatpush.msra.mxu0 0.0
    %122 = vmatpush.msra.mxu0 0.0
    %123 = vmatpush.msra.mxu0 0.0
    %124 = vmatpush.msra.mxu0 %v86
    %125 = vmatpush.msra.mxu0 %v68
    %126 = vmatpush.msra.mxu0 %v67
    %127 = vmatpush.msra.mxu0 %v66
    %128 = vmatpush.msra.mxu0 %v65
    %129 = vmatpush.msra.mxu0 %v64
    %130 = vmatmul.f32.gmra.mxu0 %v76
    %v131 = vpop.f32.mrf.mxu0
    %v132 = vadd.f32 %v106, %v131
    %133 = vmatmul.f32.gmra.mxu0 %v79
    %v134 = vpop.f32.mrf.mxu0
    %v135 = vadd.f32 %v109, %v134
    %136 = vmatmul.f32.gmra.mxu0 %v82
    %v137 = vpop.f32.mrf.mxu0
    %v138 = vadd.f32 %v112, %v137
    %139 = vdwg.mxu0
    %v140 = vmax.f32 %v132, 0.0
    %v141 = vmax.f32 %v135, 0.0
    %v142 = vmax.f32 %v138, 0.0
    %v143 = vld [vmem:[%s7] sm:$0xff]
    %v144 = vld [vmem:[%s7 + $0x8] sm:$0xff]
    %v145 = vld [vmem:[%s7 + $0x10] sm:$0xff]
    %vm146 = vcmask 195584
    %v148 = vsel %vm146, %v143, 0
    %v151 = vsel %vm146, %v144, 0
    %v154 = vsel %vm146, %v145, 0
    %156 = vmatpush.msra.mxu0 0.0
    %157 = vmatpush.msra.mxu0 0.0
    %158 = vmatpush.msra.mxu0 0.0
    %159 = vmatpush.msra.mxu0 0.0
    %160 = vmatpush.msra.mxu0 0.0
    %161 = vmatpush.msra.mxu0 0.0
    %162 = vmatpush.msra.mxu0 0.0
    %163 = vmatpush.msra.mxu0 0.0
    %164 = vmatpush.msra.mxu0 0.0
    %165 = vmatpush.msra.mxu0 0.0
    %166 = vmatpush.msra.mxu0 0.0
    %167 = vmatpush.msra.mxu0 0.0
    %168 = vmatpush.msra.mxu0 0.0
    %169 = vmatpush.msra.mxu0 %v142
    %170 = vmatpush.msra.mxu0 %v141
    %171 = vmatpush.msra.mxu0 %v140
    %172 = vmatmul.f32.gmra.mxu0 %v148
    %v173 = vpop.f32.mrf.mxu0
    %v174 = vadd.f32 0.0, %v173
    %175 = vmatmul.f32.gmra.mxu0 %v151
    %v176 = vpop.f32.mrf.mxu0
    %v177 = vadd.f32 0.0, %v176
    %178 = vmatmul.f32.gmra.mxu0 %v154
    %v179 = vpop.f32.mrf.mxu0
    %v180 = vadd.f32 0.0, %v179
    %181 = vdwg.mxu0
    %v182 = vld [vmem:[%s8] sm:$0xff]
    %v183 = vld [vmem:[%s8 + $0x8] sm:$0xff]
    %v184 = vld [vmem:[%s8 + $0x10] sm:$0xff]
    %v186 = vsel %vm146, %v182, 0
    %v189 = vsel %vm146, %v183, 0
    %v192 = vsel %vm146, %v184, 0
    %194 = vmatpush.msra.mxu0 0.0
    %195 = vmatpush.msra.mxu0 0.0
    %196 = vmatpush.msra.mxu0 0.0
    %197 = vmatpush.msra.mxu0 0.0
    %198 = vmatpush.msra.mxu0 0.0
    %199 = vmatpush.msra.mxu0 0.0
    %200 = vmatpush.msra.mxu0 0.0
    %201 = vmatpush.msra.mxu0 0.0
    %202 = vmatpush.msra.mxu0 0.0
    %203 = vmatpush.msra.mxu0 0.0
    %204 = vmatpush.msra.mxu0 0.0
    %205 = vmatpush.msra.mxu0 0.0
    %206 = vmatpush.msra.mxu0 0.0
    %207 = vmatpush.msra.mxu0 %v142
    %208 = vmatpush.msra.mxu0 %v141
    %209 = vmatpush.msra.mxu0 %v140
    %210 = vmatmul.f32.gmra.mxu0 %v186
    %v211 = vpop.f32.mrf.mxu0
    %v212 = vadd.f32 0.0, %v211
    %213 = vmatmul.f32.gmra.mxu0 %v189
    %v214 = vpop.f32.mrf.mxu0
    %v215 = vadd.f32 0.0, %v214
    %216 = vmatmul.f32.gmra.mxu0 %v192
    %v217 = vpop.f32.mrf.mxu0
    %v218 = vadd.f32 0.0, %v217
    %219 = vdwg.mxu0
    %v220 = vld [vmem:[%s3] sm:$0xff]
    %v221 = vld [vmem:[%s3 + $0x8] sm:$0xff]
    %v222 = vld [vmem:[%s3 + $0x10] sm:$0x3]
    %v223 = vld [vmem:[%s4] sm:$0xff]
    %v224 = vld [vmem:[%s4 + $0x8] sm:$0xff]
    %v225 = vld [vmem:[%s4 + $0x10] sm:$0x3]
    %vm226 = vcmask 146432
    %v228 = vsel %vm226, %v140, 0
    %v231 = vsel %vm226, %v141, 0
    %v234 = vsel %vm226, %v142, 0
    %vm236 = vcmask 1041408
    %v238 = vsel %vm236, %v225, 0
    %240 = vmatpush.msra.mxu0 0.0
    %241 = vmatpush.msra.mxu0 0.0
    %242 = vmatpush.msra.mxu0 0.0
    %243 = vmatpush.msra.mxu0 0.0
    %244 = vmatpush.msra.mxu0 0.0
    %245 = vmatpush.msra.mxu0 0.0
    %246 = vmatpush.msra.mxu0 0.0
    %247 = vmatpush.msra.mxu0 0.0
    %248 = vmatpush.msra.mxu0 0.0
    %249 = vmatpush.msra.mxu0 0.0
    %250 = vmatpush.msra.mxu0 0.0
    %251 = vmatpush.msra.mxu0 0.0
    %252 = vmatpush.msra.mxu0 0.0
    %253 = vmatpush.msra.mxu0 %v238
    %254 = vmatpush.msra.mxu0 %v224
    %255 = vmatpush.msra.mxu0 %v223
    %256 = vmatmul.f32.gmra.mxu0 %v228
    %v257 = vpop.f32.mrf.mxu0
    %v258 = vadd.f32 0.0, %v257
    %259 = vmatmul.f32.gmra.mxu0 %v231
    %v260 = vpop.f32.mrf.mxu0
    %v261 = vadd.f32 0.0, %v260
    %262 = vmatmul.f32.gmra.mxu0 %v234
    %v263 = vpop.f32.mrf.mxu0
    %v264 = vadd.f32 0.0, %v263
    %265 = vdwg.mxu0
    %v267 = vsel %vm226, %v174, 0
    %v270 = vsel %vm226, %v177, 0
    %v273 = vsel %vm226, %v180, 0
    %v276 = vsel %vm236, %v222, 0
    %278 = vmatpush.msra.mxu0 0.0
    %279 = vmatpush.msra.mxu0 0.0
    %280 = vmatpush.msra.mxu0 0.0
    %281 = vmatpush.msra.mxu0 0.0
    %282 = vmatpush.msra.mxu0 0.0
    %283 = vmatpush.msra.mxu0 0.0
    %284 = vmatpush.msra.mxu0 0.0
    %285 = vmatpush.msra.mxu0 0.0
    %286 = vmatpush.msra.mxu0 0.0
    %287 = vmatpush.msra.mxu0 0.0
    %288 = vmatpush.msra.mxu0 0.0
    %289 = vmatpush.msra.mxu0 0.0
    %290 = vmatpush.msra.mxu0 0.0
    %291 = vmatpush.msra.mxu0 %v276
    %292 = vmatpush.msra.mxu0 %v221
    %293 = vmatpush.msra.mxu0 %v220
    %294 = vmatmul.f32.gmra.mxu0 %v267
    %v295 = vpop.f32.mrf.mxu0
    %v296 = vadd.f32 %v258, %v295
    %297 = vmatmul.f32.gmra.mxu0 %v270
    %v298 = vpop.f32.mrf.mxu0
    %v299 = vadd.f32 %v261, %v298
    %300 = vmatmul.f32.gmra.mxu0 %v273
    %v301 = vpop.f32.mrf.mxu0
    %v302 = vadd.f32 %v264, %v301
    %303 = vdwg.mxu0
    %v304 = vld [vmem:[%s5] sm:$0xff]
    %v305 = vld [vmem:[%s5 + $0x8] sm:$0xff]
    %v306 = vld [vmem:[%s5 + $0x10] sm:$0x3]
    %v308 = vsel %vm226, %v212, 0
    %v311 = vsel %vm226, %v215, 0
    %v314 = vsel %vm226, %v218, 0
    %v317 = vsel %vm236, %v306, 0
    %319 = vmatpush.msra.mxu0 0.0
    %320 = vmatpush.msra.mxu0 0.0
    %321 = vmatpush.msra.mxu0 0.0
    %322 = vmatpush.msra.mxu0 0.0
    %323 = vmatpush.msra.mxu0 0.0
    %324 = vmatpush.msra.mxu0 0.0
    %325 = vmatpush.msra.mxu0 0.0
    %326 = vmatpush.msra.mxu0 0.0
    %327 = vmatpush.msra.mxu0 0.0
    %328 = vmatpush.msra.mxu0 0.0
    %329 = vmatpush.msra.mxu0 0.0
    %330 = vmatpush.msra.mxu0 0.0
    %331 = vmatpush.msra.mxu0 0.0
    %332 = vmatpush.msra.mxu0 %v317
    %333 = vmatpush.msra.mxu0 %v305
    %334 = vmatpush.msra.mxu0 %v304
    %335 = vmatmul.f32.gmra.mxu0 %v308
    %v336 = vpop.f32.mrf.mxu0
    %v337 = vadd.f32 0.0, %v336
    %338 = vmatmul.f32.gmra.mxu0 %v311
    %v339 = vpop.f32.mrf.mxu0
    %v340 = vadd.f32 0.0, %v339
    %341 = vmatmul.f32.gmra.mxu0 %v314
    %v342 = vpop.f32.mrf.mxu0
    %v343 = vadd.f32 0.0, %v342
    %344 = vdwg.mxu0
    %v345 = vadd.f32 %v296, %v337
    %v346 = vadd.f32 %v299, %v340
    %v347 = vadd.f32 %v302, %v343
    %v348 = vld [vmem:[%s6] sm:$0x1]
    %v350 = vperm.slane %v348, 0
    %v352 = vadd.f32 %v345, %v350
    %v353 = vadd.f32 %v346, %v350
    %v354 = vadd.f32 %v347, %v350
    %v355 = vmax.f32 %v352, 0.0
    %v356 = vmax.f32 %v353, 0.0
    %v357 = vmax.f32 %v354, 0.0
    %v358 = vld [vmem:[%s9] sm:$0xff]
    %v359 = vld [vmem:[%s9 + $0x8] sm:$0xff]
    %v360 = vld [vmem:[%s9 + $0x10] sm:$0xff]
    %362 = vset.pattern.permute.xlu0 0
    %363 = vperm.xlu0 %362, %v355
    %v364 = vpop.permute.xlu0 %363
    %367 = vset.pattern.permute.xlu0 0
    %368 = vperm.xlu0 %367, %v356
    %v369 = vpop.permute.xlu0 %368
    %372 = vset.pattern.permute.xlu0 0
    %373 = vperm.xlu0 %372, %v357
    %v374 = vpop.permute.xlu0 %373
    %v376 = vmul.f32 %v364, %v358
    %v377 = vmul.f32 %v369, %v359
    %v378 = vmul.f32 %v374, %v360
    %s379 = scalar_lea.vmem %s9, 24
    %v380 = vld [vmem:[%s379] sm:$0xff]
    %v381 = vld [vmem:[%s379 + $0x8] sm:$0xff]
    %v382 = vld [vmem:[%s379 + $0x10] sm:$0xff]
    %383 = vset.pattern.permute.xlu0 1
    %384 = vperm.xlu0 %383, %v355
    %v385 = vpop.permute.xlu0 %384
    %387 = vset.pattern.permute.xlu0 1
    %388 = vperm.xlu0 %387, %v356
    %v389 = vpop.permute.xlu0 %388
    %391 = vset.pattern.permute.xlu0 1
    %392 = vperm.xlu0 %391, %v357
    %v393 = vpop.permute.xlu0 %392
    %v395 = vmul.f32 %v385, %v380
    %v396 = vmul.f32 %v389, %v381
    %v397 = vmul.f32 %v393, %v382
    %v398 = vadd.f32 %v376, %v395
    %v399 = vadd.f32 %v377, %v396
    %v400 = vadd.f32 %v378, %v397
    %s401 = scalar_lea.vmem %s9, 48
    %v402 = vld [vmem:[%s401] sm:$0xff]
    %v403 = vld [vmem:[%s401 + $0x8] sm:$0xff]
    %v404 = vld [vmem:[%s401 + $0x10] sm:$0xff]
    %405 = vset.pattern.permute.xlu0 2
    %406 = vperm.xlu0 %405, %v355
    %v407 = vpop.permute.xlu0 %406
    %409 = vset.pattern.permute.xlu0 2
    %410 = vperm.xlu0 %409, %v356
    %v411 = vpop.permute.xlu0 %410
    %413 = vset.pattern.permute.xlu0 2
    %414 = vperm.xlu0 %413, %v357
    %v415 = vpop.permute.xlu0 %414
    %v417 = vmul.f32 %v407, %v402
    %v418 = vmul.f32 %v411, %v403
    %v419 = vmul.f32 %v415, %v404
    %v420 = vadd.f32 %v398, %v417
    %v421 = vadd.f32 %v399, %v418
    %v422 = vadd.f32 %v400, %v419
    %s423 = scalar_lea.vmem %s9, 72
    %v424 = vld [vmem:[%s423] sm:$0xff]
    %v425 = vld [vmem:[%s423 + $0x8] sm:$0xff]
    %v426 = vld [vmem:[%s423 + $0x10] sm:$0xff]
    %427 = vset.pattern.permute.xlu0 3
    %428 = vperm.xlu0 %427, %v355
    %v429 = vpop.permute.xlu0 %428
    %431 = vset.pattern.permute.xlu0 3
    %432 = vperm.xlu0 %431, %v356
    %v433 = vpop.permute.xlu0 %432
    %435 = vset.pattern.permute.xlu0 3
    %436 = vperm.xlu0 %435, %v357
    %v437 = vpop.permute.xlu0 %436
    %v439 = vmul.f32 %v429, %v424
    %v440 = vmul.f32 %v433, %v425
    %v441 = vmul.f32 %v437, %v426
    %v442 = vadd.f32 %v420, %v439
    %v443 = vadd.f32 %v421, %v440
    %v444 = vadd.f32 %v422, %v441
    %v445 = vld [vmem:[%s10] sm:$0x3]
    %v446 = vld [vmem:[%s11] sm:$0x1]
    %v448 = vperm.slane %v446, 0
    %v451 = vsel %vm146, %v445, 0
    %453 = vmatpush.msra.mxu0 0.0
    %454 = vmatpush.msra.mxu0 0.0
    %455 = vmatpush.msra.mxu0 0.0
    %456 = vmatpush.msra.mxu0 0.0
    %457 = vmatpush.msra.mxu0 0.0
    %458 = vmatpush.msra.mxu0 0.0
    %459 = vmatpush.msra.mxu0 0.0
    %460 = vmatpush.msra.mxu0 0.0
    %461 = vmatpush.msra.mxu0 0.0
    %462 = vmatpush.msra.mxu0 0.0
    %463 = vmatpush.msra.mxu0 0.0
    %464 = vmatpush.msra.mxu0 0.0
    %465 = vmatpush.msra.mxu0 0.0
    %466 = vmatpush.msra.mxu0 %v444
    %467 = vmatpush.msra.mxu0 %v443
    %468 = vmatpush.msra.mxu0 %v442
    %469 = vmatmul.f32.gmra.mxu0 %v451
    %v470 = vpop.f32.mrf.mxu0
    %v471 = vadd.f32 %v448, %v470
    %472 = vdwg.mxu0
    %vm473 = vcmask 58368
    %474 = vst.msk [vmem:[#allocation2] sm:$0x3] %vm473, %v471
    // Predicated region
    $region50: #{lietal_forward.1} parent=1 // pred_check
      _
    $region51: #{lietal_forward.1} parent=1 // pred_check_branch
      %476 = sbr.rel (0) target = $region53
    $region52: #{lietal_forward.1} parent=1 // pred_region
      %478 = vsyncadd [#allocation3], 0
      %s480 = sshll.u32 [#allocation2], 4
      %s481 = int_to_ptr.vmem [resolvable:$true] %s480
      %s482 = sshll.u32 %s12, 4
      %s483 = int_to_ptr.hbm [resolvable:$true] %s482
      %485 = dma.vmem_to_hbm [thread:$0]  %s481, 32, %s483, [#allocation3]
    $region53: #{lietal_forward.1} parent=1 // pred_fallthru
      _
    // Predicated region
    $region54: #{lietal_forward.1} parent=1 // pred_check
      _
    $region55: #{lietal_forward.1} parent=1 // pred_check_branch
      %487 = sbr.rel (0) target = $region57
    $region56: #{lietal_forward.1} parent=1 // pred_region
      %489 = dma.done [#allocation3], 32
    $region57: #{lietal_forward.1} parent=1 // pred_fallthru
      _
    %490 = vsyncpa [#allocation3], 1

</llo_original>
